<compile_context>
chip_gen: v7x
topology: tpu7x:2x2x1
jax: 0.10.0
libtpu: 0.0.40
codegen_flags: <defaults>
</compile_context>

<pallas_src>
import functools

import jax
import jax.numpy as jnp
import numpy as np
from jax.experimental import pallas as pl
from jax.experimental.pallas import tpu as pltpu


def attention_pool_kernel(x_ref, pos_cls_ref, pos_sp_ref, wq_ref, bq_ref,
                          wkv_ref, bkv_ref, wc_ref, bc_ref, mask_ref,
                          mask_t_ref, out_ref, *, num_heads):
    # x_ref:      (B, HW, C) f32   block of batch elements, flattened spatial
    # pos_cls_ref:(1, C)     f32   positional embedding of the class token
    # pos_sp_ref: (HW, C)    f32   positional embeddings of spatial tokens
    # wq_ref:     (C, C)     bf16  q projection (scale 1/sqrt(d) pre-folded)
    # bq_ref:     (1, C)     f32   q bias (scale pre-folded)
    # wkv_ref:    (C, 2C)    bf16  fused k|v projection
    # bkv_ref:    (1, 2C)    f32   fused k|v bias
    # wc_ref:     (C, OUT)   bf16  output projection
    # bc_ref:     (1, OUT)   f32
    # mask_ref:   (C, H)     f32   head-segment one-hot (channel -> head)
    # mask_t_ref: (H, C)     f32   its transpose (precomputed host-side)
    # out_ref:    (B, OUT)   f32   lane-dense output slab
    b, hw, c = x_ref.shape
    h = num_heads
    compute_dtype = wq_ref.dtype

    x = x_ref[...]                                           # (B, HW, C) f32
    tok = x + pos_sp_ref[...][None, :, :]                    # (B, HW, C)
    mean_tok = jnp.mean(x, axis=1) + pos_cls_ref[...]        # (B, C)

    tok2 = tok.reshape(b * hw, c).astype(compute_dtype)      # (B*HW, C) bf16
    mean2 = mean_tok.astype(compute_dtype)                   # (B, C)    bf16

    # Query for the class token only (module output x[0] depends only on it).
    q0 = jnp.dot(mean2, wq_ref[...],
                 preferred_element_type=jnp.float32) + bq_ref[...]        # (B, C)

    # Fused K/V projection for spatial tokens and for the class token.
    kv_s = jnp.dot(tok2, wkv_ref[...],
                   preferred_element_type=jnp.float32) + bkv_ref[...]     # (B*HW, 2C)
    kv_m = jnp.dot(mean2, wkv_ref[...],
                   preferred_element_type=jnp.float32) + bkv_ref[...]     # (B, 2C)
    k_s, v_s = kv_s[:, :c], kv_s[:, c:]                      # (B*HW, C)
    k_m, v_m = kv_m[:, :c], kv_m[:, c:]                      # (B, C)

    # Per-head scores via broadcast multiply (VPU) + head-segment sum (one
    # wide matmul), instead of num_heads tiny (1,d)x(L,d) MXU calls.
    mask = mask_ref[...]                                     # (C, H)
    qk_s = (q0[:, None, :] * k_s.reshape(b, hw, c)).reshape(b * hw, c)
    s_s = jnp.dot(qk_s, mask,
                  preferred_element_type=jnp.float32).reshape(b, hw, h)   # (B, HW, H)
    s_m = jnp.dot(q0 * k_m, mask,
                  preferred_element_type=jnp.float32)                     # (B, H)

    # Numerically stable softmax over HW spatial tokens + the class token.
    m_tot = jnp.maximum(jnp.max(s_s, axis=1), s_m)           # (B, H)
    e_s = jnp.exp(s_s - m_tot[:, None, :])                   # (B, HW, H)
    e_m = jnp.exp(s_m - m_tot)                               # (B, H)
    denom = jnp.sum(e_s, axis=1) + e_m                       # (B, H)
    inv = pl.reciprocal(denom, approx=True)                  # EUP slot, ~free
    a_s = e_s * inv[:, None, :]                              # (B, HW, H)
    a_m = e_m * inv                                          # (B, H)

    # Expand per-head weights back to channel width and combine with V.
    a_s_c = jnp.dot(a_s.reshape(b * hw, h), mask_t_ref[...],
                    preferred_element_type=jnp.float32).reshape(b, hw, c)
    a_m_c = jnp.dot(a_m, mask_t_ref[...],
                    preferred_element_type=jnp.float32)                   # (B, C)
    attn = jnp.sum(a_s_c * v_s.reshape(b, hw, c), axis=1) + a_m_c * v_m   # (B, C)

    # Output projection (c_proj), lane-dense batched store.
    y = jnp.dot(attn.astype(compute_dtype), wc_ref[...],
                preferred_element_type=jnp.float32) + bc_ref[...]         # (B, OUT)
    out_ref[...] = y.astype(out_ref.dtype)


def attention_pool2d(x_nchw, params, num_heads, *, batch_block=8,
                     compute_dtype=jnp.bfloat16):
    n, c, hh, ww = x_nchw.shape
    hw = hh * ww
    x_seq = x_nchw.reshape(n, c, hw).transpose(0, 2, 1).astype(jnp.float32)  # (N, HW, C)

    d = c // num_heads
    scale = 1.0 / float(d) ** 0.5

    pos = params["pos"].astype(jnp.float32)                   # (HW+1, C)
    pos_cls = pos[0:1, :]                                      # (1, C)
    pos_sp = pos[1:, :]                                        # (HW, C)

    # nn.Linear computes x @ W.T + b ; pre-transpose to (in, out).
    # Fold the 1/sqrt(d) attention scale into the q projection (weight + bias).
    wq = (params["wq"].T * scale).astype(compute_dtype)        # (C, C)
    bq = (params["bq"] * scale)[None, :].astype(jnp.float32)   # (1, C)
    wkv = jnp.concatenate([params["wk"].T, params["wv"].T],
                          axis=1).astype(compute_dtype)        # (C, 2C)
    bkv = jnp.concatenate([params["bk"], params["bv"]])[None, :].astype(jnp.float32)
    wc = params["wc"].T.astype(compute_dtype)                  # (C, OUT)
    bc = params["bc"][None, :].astype(jnp.float32)             # (1, OUT)
    out_dim = wc.shape[1]

    # Head-segment selection matrix: mask[ch, h] = 1 iff channel ch is in head h.
    head_ids = jnp.arange(c, dtype=jnp.int32) // d
    mask = (head_ids[:, None] ==
            jnp.arange(num_heads, dtype=jnp.int32)[None, :]).astype(jnp.float32)
    mask_t = mask.T

    b_blk = int(min(batch_block, n))
    grid = (pl.cdiv(n, b_blk),)

    kernel = functools.partial(attention_pool_kernel, num_heads=num_heads)
    out = pl.pallas_call(
        kernel,
        out_shape=jax.ShapeDtypeStruct((n, out_dim), jnp.float32),
        grid=grid,
        in_specs=[
            pl.BlockSpec((b_blk, hw, c), lambda b: (b, 0, 0)),    # x block
            pl.BlockSpec((1, c), lambda b: (0, 0)),               # pos_cls
            pl.BlockSpec((hw, c), lambda b: (0, 0)),              # pos_spatial
            pl.BlockSpec((c, c), lambda b: (0, 0)),               # wq
            pl.BlockSpec((1, c), lambda b: (0, 0)),               # bq
            pl.BlockSpec((c, 2 * c), lambda b: (0, 0)),           # wkv (fused)
            pl.BlockSpec((1, 2 * c), lambda b: (0, 0)),           # bkv
            pl.BlockSpec((c, out_dim), lambda b: (0, 0)),         # wc
            pl.BlockSpec((1, out_dim), lambda b: (0, 0)),         # bc
            pl.BlockSpec((c, num_heads), lambda b: (0, 0)),       # head mask
            pl.BlockSpec((num_heads, c), lambda b: (0, 0)),       # head mask^T
        ],
        out_specs=pl.BlockSpec((b_blk, out_dim), lambda b: (b, 0)),
        compiler_params=pltpu.CompilerParams(
            dimension_semantics=("parallel",),   # v7x: split batch blocks over 2 TCs
            vmem_limit_bytes=48 * 1024 * 1024,   # headroom below v7x's 64 MiB VMEM
        ),
    )(x_seq, pos_cls, pos_sp, wq, bq, wkv, bkv, wc, bc, mask, mask_t)
    return out                                                   # (N, out_dim)


def attention_pool2d_reference(x_nchw, params, num_heads):
    """Pure-JAX (f32) reimplementation of the PyTorch forward, for verification."""
    n, c, h, w = x_nchw.shape
    x = x_nchw.reshape(n, c, h * w).transpose(2, 0, 1)               # (HW, N, C)
    x = jnp.concatenate([x.mean(axis=0, keepdims=True), x], axis=0)  # (L, N, C)
    x = x + params["pos"][:, None, :]
    q = x[0:1] @ params["wq"].T + params["bq"]                       # (1, N, C)
    k = x @ params["wk"].T + params["bk"]                            # (L, N, C)
    v = x @ params["wv"].T + params["bv"]
    l = k.shape[0]
    d = c // num_heads
    qh = q.reshape(1, n, num_heads, d)
    kh = k.reshape(l, n, num_heads, d)
    vh = v.reshape(l, n, num_heads, d)
    s = jnp.einsum("qnhd,lnhd->nhql", qh, kh) / jnp.sqrt(jnp.float32(d))
    a = jax.nn.softmax(s, axis=-1)
    o = jnp.einsum("nhql,lnhd->qnhd", a, vh).reshape(1, n, c)
    y = o @ params["wc"].T + params["bc"]
    return y[0]                                                      # (N, out_dim)


if __name__ == "__main__":
    # module config: spacial_dim=4, embed_dim=32, num_heads=4, output_dim=16
    spacial_dim, embed_dim, num_heads, output_dim = 4, 32, 4, 16
    batch = 2
    hw = spacial_dim * spacial_dim
    L = hw + 1

    key = jax.random.PRNGKey(0)
    ks = jax.random.split(key, 10)
    params = {
        "pos": jax.random.normal(ks[0], (L, embed_dim), jnp.float32) / embed_dim ** 0.5,
        "wq": jax.random.normal(ks[1], (embed_dim, embed_dim), jnp.float32) * 0.05,
        "bq": jax.random.normal(ks[2], (embed_dim,), jnp.float32) * 0.05,
        "wk": jax.random.normal(ks[3], (embed_dim, embed_dim), jnp.float32) * 0.05,
        "bk": jax.random.normal(ks[4], (embed_dim,), jnp.float32) * 0.05,
        "wv": jax.random.normal(ks[5], (embed_dim, embed_dim), jnp.float32) * 0.05,
        "bv": jax.random.normal(ks[6], (embed_dim,), jnp.float32) * 0.05,
        "wc": jax.random.normal(ks[7], (output_dim, embed_dim), jnp.float32) * 0.05,
        "bc": jax.random.normal(ks[8], (output_dim,), jnp.float32) * 0.05,
    }
    x = jax.random.normal(ks[9], (batch, embed_dim, spacial_dim, spacial_dim),
                          jnp.float32)

    out = attention_pool2d(x, params, num_heads)
    out = jax.block_until_ready(out)

    ref = attention_pool2d_reference(x, params, num_heads)
    assert out.shape == (batch, output_dim), out.shape
    # bf16 MXU operands with f32 accumulation -> relaxed (but still tight) tolerance.
    np.testing.assert_allclose(np.asarray(out), np.asarray(ref), rtol=2e-2, atol=2e-2)
    print("KERNEL_OK")
</pallas_src>

<mosaic_0001>
module attributes {stable_mosaic.version = 11 : i64} {
  func.func @attention_pool_kernel(%arg0: i32, %arg1: memref<2x16x32xf32, #tpu.memory_space<vmem>>, %arg2: memref<1x32xf32, #tpu.memory_space<vmem>>, %arg3: memref<16x32xf32, #tpu.memory_space<vmem>>, %arg4: memref<32x32xbf16, #tpu.memory_space<vmem>>, %arg5: memref<1x32xf32, #tpu.memory_space<vmem>>, %arg6: memref<32x64xbf16, #tpu.memory_space<vmem>>, %arg7: memref<1x64xf32, #tpu.memory_space<vmem>>, %arg8: memref<32x16xbf16, #tpu.memory_space<vmem>>, %arg9: memref<1x16xf32, #tpu.memory_space<vmem>>, %arg10: memref<32x4xf32, #tpu.memory_space<vmem>>, %arg11: memref<4x32xf32, #tpu.memory_space<vmem>>, %arg12: memref<2x16xf32, #tpu.memory_space<vmem>>) attributes {dimension_semantics = [#tpu.dimension_semantics<parallel>], iteration_bounds = array<i64: 1>, scalar_prefetch = 0 : i64, scratch_operands = 0 : i64, tpu.core_type = #tpu.core_type<tc>, window_params = [{transform_indices = @transform_0, window_bounds = array<i64: 2, 16, 32>}, {pipeline_mode = #tpu.pipeline_mode<synchronous>, transform_indices = @transform_1, window_bounds = array<i64: 1, 32>}, {pipeline_mode = #tpu.pipeline_mode<synchronous>, transform_indices = @transform_2, window_bounds = array<i64: 16, 32>}, {pipeline_mode = #tpu.pipeline_mode<synchronous>, transform_indices = @transform_3, window_bounds = array<i64: 32, 32>}, {pipeline_mode = #tpu.pipeline_mode<synchronous>, transform_indices = @transform_4, window_bounds = array<i64: 1, 32>}, {pipeline_mode = #tpu.pipeline_mode<synchronous>, transform_indices = @transform_5, window_bounds = array<i64: 32, 64>}, {pipeline_mode = #tpu.pipeline_mode<synchronous>, transform_indices = @transform_6, window_bounds = array<i64: 1, 64>}, {pipeline_mode = #tpu.pipeline_mode<synchronous>, transform_indices = @transform_7, window_bounds = array<i64: 32, 16>}, {pipeline_mode = #tpu.pipeline_mode<synchronous>, transform_indices = @transform_8, window_bounds = array<i64: 1, 16>}, {pipeline_mode = #tpu.pipeline_mode<synchronous>, transform_indices = @transform_9, window_bounds = array<i64: 32, 4>}, {pipeline_mode = #tpu.pipeline_mode<synchronous>, transform_indices = @transform_10, window_bounds = array<i64: 4, 32>}, {transform_indices = @transform_11, window_bounds = array<i64: 2, 16>}]} {
    %c0 = arith.constant 0 : index
    %c0_0 = arith.constant 0 : index
    %c0_1 = arith.constant 0 : index
    %0 = vector.load %arg1[%c0, %c0_0, %c0_1] : memref<2x16x32xf32, #tpu.memory_space<vmem>>, vector<2x16x32xf32>
    %c0_2 = arith.constant 0 : index
    %c0_3 = arith.constant 0 : index
    %1 = vector.load %arg3[%c0_2, %c0_3] : memref<16x32xf32, #tpu.memory_space<vmem>>, vector<16x32xf32>
    %2 = vector.shape_cast %1 : vector<16x32xf32> to vector<1x16x32xf32>
    %3 = vector.broadcast %2 : vector<1x16x32xf32> to vector<2x16x32xf32>
    %4 = arith.addf %0, %3 : vector<2x16x32xf32>
    %cst = arith.constant dense<0.000000e+00> : vector<2x32xf32>
    %5 = vector.multi_reduction <add>, %0, %cst [1] : vector<2x16x32xf32> to vector<2x32xf32>
    %cst_4 = arith.constant 1.600000e+01 : f32
    %6 = vector.broadcast %cst_4 : f32 to vector<2x32xf32>
    %7 = arith.divf %5, %6 : vector<2x32xf32>
    %c0_5 = arith.constant 0 : index
    %c0_6 = arith.constant 0 : index
    %8 = vector.load %arg2[%c0_5, %c0_6] : memref<1x32xf32, #tpu.memory_space<vmem>>, vector<1x32xf32>
    %9 = vector.broadcast %8 : vector<1x32xf32> to vector<2x32xf32>
    %10 = arith.addf %7, %9 : vector<2x32xf32>
    %11 = vector.shape_cast %4 : vector<2x16x32xf32> to vector<32x32xf32>
    %12 = arith.truncf %11 : vector<32x32xf32> to vector<32x32xbf16>
    %13 = arith.truncf %10 : vector<2x32xf32> to vector<2x32xbf16>
    %c0_7 = arith.constant 0 : index
    %c0_8 = arith.constant 0 : index
    %14 = vector.load %arg4[%c0_7, %c0_8] : memref<32x32xbf16, #tpu.memory_space<vmem>>, vector<32x32xbf16>
    %cst_9 = arith.constant dense<0.000000e+00> : vector<2x32xf32>
    %15 = tpu.matmul %13, %14, %cst_9 {dimension_numbers = #tpu.dot_dimension_numbers<[1], [0], [0], [1], [0, 0, 1, 1], [], []>} : vector<2x32xbf16>, vector<32x32xbf16>, vector<2x32xf32> -> vector<2x32xf32>
    %c0_10 = arith.constant 0 : index
    %c0_11 = arith.constant 0 : index
    %16 = vector.load %arg5[%c0_10, %c0_11] : memref<1x32xf32, #tpu.memory_space<vmem>>, vector<1x32xf32>
    %17 = vector.broadcast %16 : vector<1x32xf32> to vector<2x32xf32>
    %18 = arith.addf %15, %17 : vector<2x32xf32>
    %c0_12 = arith.constant 0 : index
    %c0_13 = arith.constant 0 : index
    %19 = vector.load %arg6[%c0_12, %c0_13] : memref<32x64xbf16, #tpu.memory_space<vmem>>, vector<32x64xbf16>
    %cst_14 = arith.constant dense<0.000000e+00> : vector<32x64xf32>
    %20 = tpu.matmul %12, %19, %cst_14 {dimension_numbers = #tpu.dot_dimension_numbers<[1], [0], [0], [1], [0, 0, 1, 1], [], []>} : vector<32x32xbf16>, vector<32x64xbf16>, vector<32x64xf32> -> vector<32x64xf32>
    %c0_15 = arith.constant 0 : index
    %c0_16 = arith.constant 0 : index
    %21 = vector.load %arg7[%c0_15, %c0_16] : memref<1x64xf32, #tpu.memory_space<vmem>>, vector<1x64xf32>
    %22 = vector.broadcast %21 : vector<1x64xf32> to vector<32x64xf32>
    %23 = arith.addf %20, %22 : vector<32x64xf32>
    %c0_17 = arith.constant 0 : index
    %c0_18 = arith.constant 0 : index
    %24 = vector.load %arg6[%c0_17, %c0_18] : memref<32x64xbf16, #tpu.memory_space<vmem>>, vector<32x64xbf16>
    %cst_19 = arith.constant dense<0.000000e+00> : vector<2x64xf32>
    %25 = tpu.matmul %13, %24, %cst_19 {dimension_numbers = #tpu.dot_dimension_numbers<[1], [0], [0], [1], [0, 0, 1, 1], [], []>} : vector<2x32xbf16>, vector<32x64xbf16>, vector<2x64xf32> -> vector<2x64xf32>
    %c0_20 = arith.constant 0 : index
    %c0_21 = arith.constant 0 : index
    %26 = vector.load %arg7[%c0_20, %c0_21] : memref<1x64xf32, #tpu.memory_space<vmem>>, vector<1x64xf32>
    %27 = vector.broadcast %26 : vector<1x64xf32> to vector<2x64xf32>
    %28 = arith.addf %25, %27 : vector<2x64xf32>
    %29 = vector.extract_strided_slice %23 {offsets = [0, 0], sizes = [32, 32], strides = [1, 1]} : vector<32x64xf32> to vector<32x32xf32>
    %30 = vector.extract_strided_slice %23 {offsets = [0, 32], sizes = [32, 32], strides = [1, 1]} : vector<32x64xf32> to vector<32x32xf32>
    %31 = vector.extract_strided_slice %28 {offsets = [0, 0], sizes = [2, 32], strides = [1, 1]} : vector<2x64xf32> to vector<2x32xf32>
    %32 = vector.extract_strided_slice %28 {offsets = [0, 32], sizes = [2, 32], strides = [1, 1]} : vector<2x64xf32> to vector<2x32xf32>
    %c0_22 = arith.constant 0 : index
    %c0_23 = arith.constant 0 : index
    %33 = vector.load %arg10[%c0_22, %c0_23] : memref<32x4xf32, #tpu.memory_space<vmem>>, vector<32x4xf32>
    %34 = vector.shape_cast %18 : vector<2x32xf32> to vector<2x1x32xf32>
    %35 = vector.shape_cast %29 : vector<32x32xf32> to vector<2x16x32xf32>
    %36 = vector.broadcast %34 : vector<2x1x32xf32> to vector<2x16x32xf32>
    %37 = arith.mulf %36, %35 : vector<2x16x32xf32>
    %38 = vector.shape_cast %37 : vector<2x16x32xf32> to vector<32x32xf32>
    %cst_24 = arith.constant dense<0.000000e+00> : vector<32x4xf32>
    %39 = tpu.matmul %38, %33, %cst_24 {dimension_numbers = #tpu.dot_dimension_numbers<[1], [0], [0], [1], [0, 0, 1, 1], [], []>} : vector<32x32xf32>, vector<32x4xf32>, vector<32x4xf32> -> vector<32x4xf32>
    %40 = vector.shape_cast %39 : vector<32x4xf32> to vector<2x16x4xf32>
    %41 = arith.mulf %18, %31 : vector<2x32xf32>
    %cst_25 = arith.constant dense<0.000000e+00> : vector<2x4xf32>
    %42 = tpu.matmul %41, %33, %cst_25 {dimension_numbers = #tpu.dot_dimension_numbers<[1], [0], [0], [1], [0, 0, 1, 1], [], []>} : vector<2x32xf32>, vector<32x4xf32>, vector<2x4xf32> -> vector<2x4xf32>
    %cst_26 = arith.constant dense<0xFF800000> : vector<2x4xf32>
    %43 = vector.multi_reduction <maximumf>, %40, %cst_26 [1] : vector<2x16x4xf32> to vector<2x4xf32>
    %44 = arith.maximumf %43, %42 : vector<2x4xf32>
    %45 = vector.shape_cast %44 : vector<2x4xf32> to vector<2x1x4xf32>
    %46 = vector.broadcast %45 : vector<2x1x4xf32> to vector<2x16x4xf32>
    %47 = arith.subf %40, %46 : vector<2x16x4xf32>
    %48 = math.exp %47 : vector<2x16x4xf32>
    %49 = arith.subf %42, %44 : vector<2x4xf32>
    %50 = math.exp %49 : vector<2x4xf32>
    %cst_27 = arith.constant dense<0.000000e+00> : vector<2x4xf32>
    %51 = vector.multi_reduction <add>, %48, %cst_27 [1] : vector<2x16x4xf32> to vector<2x4xf32>
    %52 = arith.addf %51, %50 : vector<2x4xf32>
    %53 = tpu.reciprocal %52 {approx = true} : vector<2x4xf32> -> vector<2x4xf32>
    %54 = vector.shape_cast %53 : vector<2x4xf32> to vector<2x1x4xf32>
    %55 = vector.broadcast %54 : vector<2x1x4xf32> to vector<2x16x4xf32>
    %56 = arith.mulf %48, %55 : vector<2x16x4xf32>
    %57 = arith.mulf %50, %53 : vector<2x4xf32>
    %58 = vector.shape_cast %56 : vector<2x16x4xf32> to vector<32x4xf32>
    %c0_28 = arith.constant 0 : index
    %c0_29 = arith.constant 0 : index
    %59 = vector.load %arg11[%c0_28, %c0_29] : memref<4x32xf32, #tpu.memory_space<vmem>>, vector<4x32xf32>
    %cst_30 = arith.constant dense<0.000000e+00> : vector<32x32xf32>
    %60 = tpu.matmul %58, %59, %cst_30 {dimension_numbers = #tpu.dot_dimension_numbers<[1], [0], [0], [1], [0, 0, 1, 1], [], []>} : vector<32x4xf32>, vector<4x32xf32>, vector<32x32xf32> -> vector<32x32xf32>
    %61 = vector.shape_cast %60 : vector<32x32xf32> to vector<2x16x32xf32>
    %c0_31 = arith.constant 0 : index
    %c0_32 = arith.constant 0 : index
    %62 = vector.load %arg11[%c0_31, %c0_32] : memref<4x32xf32, #tpu.memory_space<vmem>>, vector<4x32xf32>
    %cst_33 = arith.constant dense<0.000000e+00> : vector<2x32xf32>
    %63 = tpu.matmul %57, %62, %cst_33 {dimension_numbers = #tpu.dot_dimension_numbers<[1], [0], [0], [1], [0, 0, 1, 1], [], []>} : vector<2x4xf32>, vector<4x32xf32>, vector<2x32xf32> -> vector<2x32xf32>
    %64 = vector.shape_cast %30 : vector<32x32xf32> to vector<2x16x32xf32>
    %65 = arith.mulf %61, %64 : vector<2x16x32xf32>
    %cst_34 = arith.constant dense<0.000000e+00> : vector<2x32xf32>
    %66 = vector.multi_reduction <add>, %65, %cst_34 [1] : vector<2x16x32xf32> to vector<2x32xf32>
    %67 = arith.mulf %63, %32 : vector<2x32xf32>
    %68 = arith.addf %66, %67 : vector<2x32xf32>
    %69 = arith.truncf %68 : vector<2x32xf32> to vector<2x32xbf16>
    %c0_35 = arith.constant 0 : index
    %c0_36 = arith.constant 0 : index
    %70 = vector.load %arg8[%c0_35, %c0_36] : memref<32x16xbf16, #tpu.memory_space<vmem>>, vector<32x16xbf16>
    %cst_37 = arith.constant dense<0.000000e+00> : vector<2x16xf32>
    %71 = tpu.matmul %69, %70, %cst_37 {dimension_numbers = #tpu.dot_dimension_numbers<[1], [0], [0], [1], [0, 0, 1, 1], [], []>} : vector<2x32xbf16>, vector<32x16xbf16>, vector<2x16xf32> -> vector<2x16xf32>
    %c0_38 = arith.constant 0 : index
    %c0_39 = arith.constant 0 : index
    %72 = vector.load %arg9[%c0_38, %c0_39] : memref<1x16xf32, #tpu.memory_space<vmem>>, vector<1x16xf32>
    %73 = vector.broadcast %72 : vector<1x16xf32> to vector<2x16xf32>
    %74 = arith.addf %71, %73 : vector<2x16xf32>
    %c0_40 = arith.constant 0 : index
    %c0_41 = arith.constant 0 : index
    %75 = vector.load %arg12[%c0_40, %c0_41] : memref<2x16xf32, #tpu.memory_space<vmem>>, vector<2x16xf32>
    tpu.vector_store %arg12[%c0_40, %c0_41], %74 {strides = array<i32>} : memref<2x16xf32, #tpu.memory_space<vmem>>, vector<2x16xf32>,
    return
  }
  func.func @transform_0(%arg0: i32) -> (i32, i32, i32) {
    %c0_i32 = arith.constant 0 : i32
    %c0_i32_0 = arith.constant 0 : i32
    %c0_i32_1 = arith.constant 0 : i32
    return %arg0, %c0_i32, %c0_i32_0 : i32, i32, i32
  }
  func.func @transform_1(%arg0: i32) -> (i32, i32) {
    %c0_i32 = arith.constant 0 : i32
    %c0_i32_0 = arith.constant 0 : i32
    %c0_i32_1 = arith.constant 0 : i32
    return %c0_i32, %c0_i32_0 : i32, i32
  }
  func.func @transform_2(%arg0: i32) -> (i32, i32) {
    %c0_i32 = arith.constant 0 : i32
    %c0_i32_0 = arith.constant 0 : i32
    %c0_i32_1 = arith.constant 0 : i32
    return %c0_i32, %c0_i32_0 : i32, i32
  }
  func.func @transform_3(%arg0: i32) -> (i32, i32) {
    %c0_i32 = arith.constant 0 : i32
    %c0_i32_0 = arith.constant 0 : i32
    %c0_i32_1 = arith.constant 0 : i32
    return %c0_i32, %c0_i32_0 : i32, i32
  }
  func.func @transform_4(%arg0: i32) -> (i32, i32) {
    %c0_i32 = arith.constant 0 : i32
    %c0_i32_0 = arith.constant 0 : i32
    %c0_i32_1 = arith.constant 0 : i32
    return %c0_i32, %c0_i32_0 : i32, i32
  }
  func.func @transform_5(%arg0: i32) -> (i32, i32) {
    %c0_i32 = arith.constant 0 : i32
    %c0_i32_0 = arith.constant 0 : i32
    %c0_i32_1 = arith.constant 0 : i32
    return %c0_i32, %c0_i32_0 : i32, i32
  }
  func.func @transform_6(%arg0: i32) -> (i32, i32) {
    %c0_i32 = arith.constant 0 : i32
    %c0_i32_0 = arith.constant 0 : i32
    %c0_i32_1 = arith.constant 0 : i32
    return %c0_i32, %c0_i32_0 : i32, i32
  }
  func.func @transform_7(%arg0: i32) -> (i32, i32) {
    %c0_i32 = arith.constant 0 : i32
    %c0_i32_0 = arith.constant 0 : i32
    %c0_i32_1 = arith.constant 0 : i32
    return %c0_i32, %c0_i32_0 : i32, i32
  }
  func.func @transform_8(%arg0: i32) -> (i32, i32) {
    %c0_i32 = arith.constant 0 : i32
    %c0_i32_0 = arith.constant 0 : i32
    %c0_i32_1 = arith.constant 0 : i32
    return %c0_i32, %c0_i32_0 : i32, i32
  }
  func.func @transform_9(%arg0: i32) -> (i32, i32) {
    %c0_i32 = arith.constant 0 : i32
    %c0_i32_0 = arith.constant 0 : i32
    %c0_i32_1 = arith.constant 0 : i32
    return %c0_i32, %c0_i32_0 : i32, i32
  }
  func.func @transform_10(%arg0: i32) -> (i32, i32) {
    %c0_i32 = arith.constant 0 : i32
    %c0_i32_0 = arith.constant 0 : i32
    %c0_i32_1 = arith.constant 0 : i32
    return %c0_i32, %c0_i32_0 : i32, i32
  }
  func.func @transform_11(%arg0: i32) -> (i32, i32) {
    %c0_i32 = arith.constant 0 : i32
    %c0_i32_0 = arith.constant 0 : i32
    return %arg0, %c0_i32 : i32, i32
  }
}

</mosaic_0001>

<llo_original>
// kernel: tpu_custom_call.1
$region0: #{tpu_custom_call.1}
  #allocation0 [shape = 'u32[]', space=smem, size = 0x4, offset = 0x4, fixed_abs, tag = 'smem constant byte address 0x4 - core index']
  #allocation1 [shape = 'u32[144,128]{1,0:T(1,128)}', space=vmem, size = 0x12000, scoped, tag = 'internal scratch']
  %s0 = inlined_call_operand.vmem [shape: f32[2,16,32], index: 0, kind: input, shape index: {}]
  %s1 = inlined_call_operand.vmem [shape: f32[1,32], index: 1, kind: input, shape index: {}]
  %s2 = inlined_call_operand.vmem [shape: f32[16,32], index: 2, kind: input, shape index: {}]
  %s3 = inlined_call_operand.vmem [shape: bf16[32,32], index: 3, kind: input, shape index: {}]
  %s4 = inlined_call_operand.vmem [shape: f32[1,32], index: 4, kind: input, shape index: {}]
  %s5 = inlined_call_operand.hbm [shape: bf16[32,64], index: 5, kind: input, shape index: {}]
  %s6 = inlined_call_operand.hbm [shape: f32[1,64], index: 6, kind: input, shape index: {}]
  %s7 = inlined_call_operand.vmem [shape: bf16[32,16], index: 7, kind: input, shape index: {}]
  %s8 = inlined_call_operand.vmem [shape: f32[1,16], index: 8, kind: input, shape index: {}]
  %s9 = inlined_call_operand.vmem [shape: f32[32,4], index: 9, kind: input, shape index: {}]
  %s10 = inlined_call_operand.vmem [shape: f32[4,32], index: 10, kind: input, shape index: {}]
  %s11 = inlined_call_operand.hbm [shape: f32[2,16], index: 11, kind: output, shape index: {}]
  %s12 = sld [smem:[#allocation0]]
  $region62: #{tpu_custom_call.1} parent=0
    _
  %s14 = ssub.s32 1, %s12
  %s15 = scalar_select 0, %s14, %s12
  $region1: #{tpu_custom_call.1} parent=0
    #allocation2 [shape = 'u8[8192]{0}', space=vmem, size = 0x2000, scoped, tag = 'input window, operand 5, single buffered']
    #allocation3 [shape = 's32[1]{0}', space=sflag, size = 0x4, scoped, tag = 'scoped memory for tpu_custom_call.1']
    #allocation4 [shape = 's32[1]{0}', space=sflag, size = 0x4, scoped, tag = 'scoped memory for tpu_custom_call.1']
    #allocation5 [shape = 'u8[512]{0}', space=vmem, size = 0x400, scoped, tag = 'input window, operand 6, single buffered']
    #allocation6 [shape = 's32[1]{0}', space=sflag, size = 0x4, scoped, tag = 'scoped memory for tpu_custom_call.1']
    #allocation7 [shape = 'u8[1024]{0}', space=vmem, size = 0x400, scoped, tag = 'output window, operand 0, single buffered']
    %16 = vsyncpa [#allocation3], 0
    %17 = vsyncpa [#allocation6], 0
    %18 = vsyncpa [#allocation4], 0
    // Predicated region
    $region2: #{tpu_custom_call.1} parent=1 // pred_check
      _
    $region3: #{tpu_custom_call.1} parent=1 // pred_check_branch
      %20 = sbr.rel (0) target = $region5
    $region4: #{tpu_custom_call.1} parent=1 // pred_region
      _
    $region5: #{tpu_custom_call.1} parent=1 // pred_fallthru
      _
    // Predicated region
    $region6: #{tpu_custom_call.1} parent=1 // pred_check
      _
    $region7: #{tpu_custom_call.1} parent=1 // pred_check_branch
      %22 = sbr.rel (0) target = $region9
    $region8: #{tpu_custom_call.1} parent=1 // pred_region
      _
    $region9: #{tpu_custom_call.1} parent=1 // pred_fallthru
      _
    // Predicated region
    $region10: #{tpu_custom_call.1} parent=1 // pred_check
      _
    $region11: #{tpu_custom_call.1} parent=1 // pred_check_branch
      %24 = sbr.rel (0) target = $region13
    $region12: #{tpu_custom_call.1} parent=1 // pred_region
      _
    $region13: #{tpu_custom_call.1} parent=1 // pred_fallthru
      _
    // Predicated region
    $region14: #{tpu_custom_call.1} parent=1 // pred_check
      _
    $region15: #{tpu_custom_call.1} parent=1 // pred_check_branch
      %26 = sbr.rel (0) target = $region17
    $region16: #{tpu_custom_call.1} parent=1 // pred_region
      _
    $region17: #{tpu_custom_call.1} parent=1 // pred_fallthru
      _
    // Predicated region
    $region18: #{tpu_custom_call.1} parent=1 // pred_check
      _
    $region19: #{tpu_custom_call.1} parent=1 // pred_check_branch
      %28 = sbr.rel (0) target = $region21
    $region20: #{tpu_custom_call.1} parent=1 // pred_region
      _
    $region21: #{tpu_custom_call.1} parent=1 // pred_fallthru
      _
    // Predicated region
    $region22: #{tpu_custom_call.1} parent=1 // pred_check
      _
    $region23: #{tpu_custom_call.1} parent=1 // pred_check_branch
      %30 = sbr.rel (0) target = $region25
    $region24: #{tpu_custom_call.1} parent=1 // pred_region
      %s32 = ssub.s32 256, 256
      %33 = vsyncadd [#allocation3], %s32
      %s34 = sshll.u32 [#allocation2], 4
      %s35 = int_to_ptr.vmem [resolvable:$true] %s34
      %40 = dma.hbm_to_vmem [thread:$0]  %s5, 256, %s35, [#allocation3], 64, 64, 4
    $region25: #{tpu_custom_call.1} parent=1 // pred_fallthru
      _
    // Predicated region
    $region26: #{tpu_custom_call.1} parent=1 // pred_check
      _
    $region27: #{tpu_custom_call.1} parent=1 // pred_check_branch
      %42 = sbr.rel (0) target = $region29
    $region28: #{tpu_custom_call.1} parent=1 // pred_region
      %s44 = ssub.s32 16, 16
      %45 = vsyncadd [#allocation6], %s44
      %s47 = sshll.u32 [#allocation5], 4
      %s48 = int_to_ptr.vmem [resolvable:$true] %s47
      %50 = dma.hbm_to_vmem [thread:$0]  %s6, 16, %s48, [#allocation6]
    $region29: #{tpu_custom_call.1} parent=1 // pred_fallthru
      _
    // Predicated region
    $region30: #{tpu_custom_call.1} parent=1 // pred_check
      _
    $region31: #{tpu_custom_call.1} parent=1 // pred_check_branch
      %52 = sbr.rel (0) target = $region33
    $region32: #{tpu_custom_call.1} parent=1 // pred_region
      _
    $region33: #{tpu_custom_call.1} parent=1 // pred_fallthru
      _
    // Predicated region
    $region34: #{tpu_custom_call.1} parent=1 // pred_check
      _
    $region35: #{tpu_custom_call.1} parent=1 // pred_check_branch
      %54 = sbr.rel (0) target = $region37
    $region36: #{tpu_custom_call.1} parent=1 // pred_region
      _
    $region37: #{tpu_custom_call.1} parent=1 // pred_fallthru
      _
    // Predicated region
    $region38: #{tpu_custom_call.1} parent=1 // pred_check
      _
    $region39: #{tpu_custom_call.1} parent=1 // pred_check_branch
      %56 = sbr.rel (0) target = $region41
    $region40: #{tpu_custom_call.1} parent=1 // pred_region
      _
    $region41: #{tpu_custom_call.1} parent=1 // pred_fallthru
      _
    // Predicated region
    $region42: #{tpu_custom_call.1} parent=1 // pred_check
      _
    $region43: #{tpu_custom_call.1} parent=1 // pred_check_branch
      %58 = sbr.rel (0) target = $region45
    $region44: #{tpu_custom_call.1} parent=1 // pred_region
      _
    $region45: #{tpu_custom_call.1} parent=1 // pred_fallthru
      _
    // Predicated region
    $region46: #{tpu_custom_call.1} parent=1 // pred_check
      _
    $region47: #{tpu_custom_call.1} parent=1 // pred_check_branch
      %60 = sbr.rel (0) target = $region49
    $region48: #{tpu_custom_call.1} parent=1 // pred_region
      %61 = dma.done [#allocation3], 256
    $region49: #{tpu_custom_call.1} parent=1 // pred_fallthru
      _
    // Predicated region
    $region50: #{tpu_custom_call.1} parent=1 // pred_check
      _
    $region51: #{tpu_custom_call.1} parent=1 // pred_check_branch
      %63 = sbr.rel (0) target = $region53
    $region52: #{tpu_custom_call.1} parent=1 // pred_region
      %64 = dma.done [#allocation6], 16
    $region53: #{tpu_custom_call.1} parent=1 // pred_fallthru
      _
    %v66 = vld [vmem:[%s0] sm:$0xff]
    %v67 = vld [vmem:[%s0 + $0x8] sm:$0xff]
    %v68 = vld [vmem:[%s0 + $0x10] sm:$0xff]
    %v69 = vld [vmem:[%s0 + $0x18] sm:$0xff]
    %v70 = vld [vmem:[%s2] sm:$0xff]
    %v71 = vld [vmem:[%s2 + $0x8] sm:$0xff]
    %v72 = vadd.f32 %v66, %v70
    %v73 = vadd.f32 %v67, %v71
    %v74 = vadd.f32 %v68, %v70
    %v75 = vadd.f32 %v69, %v71
    %vm76 = vcmask 261120
    %v77 = vsel %vm76, %v66, 0.0
    %v78 = vsel %vm76, %v67, 0.0
    %v79 = vadd.f32 %v77, %v78
    %v80 = vrot.slane %v79, 4
    %v81 = vadd.f32 %v79, %v80
    %v82 = vrot.slane %v81, 2
    %v83 = vadd.f32 %v81, %v82
    %v84 = vrot.slane %v83, 1
    %v85 = vadd.f32 %v83, %v84
    %v86 = vsel %vm76, %v68, 0.0
    %v87 = vsel %vm76, %v69, 0.0
    %v88 = vadd.f32 %v86, %v87
    %v89 = vrot.slane %v88, 4
    %v90 = vadd.f32 %v88, %v89
    %v91 = vrot.slane %v90, 2
    %v92 = vadd.f32 %v90, %v91
    %v93 = vrot.slane %v92, 1
    %v94 = vadd.f32 %v92, %v93
    %v95 = vrcp.pop 16.0
    %v96 = vmul.f32 %v85, %v95
    %v97 = vmul.f32 %v94, %v95
    %v98 = vld [vmem:[%s1] sm:$0x1]
    %v100 = vlaneseq
    %v101 = vshrl.u32 %v100, 7
    %v102 = vsub.s32 0, %v101
    %v103 = vrot.slane %v98, %v102
    %v105 = vadd.f32 %v96, %v103
    %v106 = vadd.f32 %v97, %v103
    %v107 = vpack.c.bf16 %v73, %v72
    %v108 = vpack.c.bf16 %v75, %v74
    %v109 = vpack.c.bf16 %v105, %v105
    %v110 = vpack.c.bf16 %v106, %v106
    %v111 = vld [vmem:[%s3] sm:$0xf]
    %v112 = vld [vmem:[%s3 + $0x4] sm:$0xf]
    %v113 = vld [vmem:[%s3 + $0x8] sm:$0xf]
    %v114 = vld [vmem:[%s3 + $0xc] sm:$0xf]
    %v115 = vld [vmem:[%s4] sm:$0x1]
    %v117 = vlaneseq
    %v118 = vshrl.u32 %v117, 7
    %v119 = vsub.s32 0, %v118
    %v120 = vrot.slane %v115, %v119
    %v124 = vunpack.c.l.b16 %v109
    %v125 = vunpack.c.l.b16 %v110
    %v126 = vrot.slane %v125, 7
    %vm127 = vcmask 1041409
    %v128 = vsel %vm127, %v126, %v124
    %v129 = vpack.c.b16 %v128, %v128
    %v134 = vunpack.c.l.b16 %v111
    %v135 = vunpack.c.l.b16 %v112
    %v136 = vunpack.c.l.b16 %v113
    %v137 = vunpack.c.l.b16 %v114
    %v138 = vpack.c.b16 %v135, %v134
    %v139 = vpack.c.b16 %v137, %v136
    %v143 = vsel %vm76, %v129, 0
    %145 = vmatprep.subr.bf16.mxu0 0
    %146 = vmatpush1.bf16.msra.mxu0 %v138
    %147 = vmatprep.subr.bf16.mxu0 0
    %148 = vmatpush1.bf16.msra.mxu0 %v139
    %149 = vmatprep.subr.bf16.mxu0 0
    %150 = vmatpush1.bf16.msra.mxu0 0
    %151 = vmatprep.subr.bf16.mxu0 0
    %152 = vmatpush1.bf16.msra.mxu0 0
    %153 = vmatprep.subr.bf16.mxu0 0
    %154 = vmatpush1.bf16.msra.mxu0 0
    %155 = vmatprep.subr.bf16.mxu0 0
    %156 = vmatpush1.bf16.msra.mxu0 0
    %157 = vmatprep.subr.bf16.mxu0 0
    %158 = vmatpush1.bf16.msra.mxu0 0
    %159 = vmatprep.subr.bf16.mxu0 0
    %160 = vmatpush1.bf16.msra.mxu0 0
    %161 = vmatprep.subr.bf16.mxu0 0
    %162 = vmatpush1.bf16.msra.mxu0 0
    %163 = vmatprep.subr.bf16.mxu0 0
    %164 = vmatpush1.bf16.msra.mxu0 0
    %165 = vmatprep.subr.bf16.mxu0 0
    %166 = vmatpush1.bf16.msra.mxu0 0
    %167 = vmatprep.subr.bf16.mxu0 0
    %168 = vmatpush1.bf16.msra.mxu0 0
    %169 = vmatprep.subr.bf16.mxu0 0
    %170 = vmatpush1.bf16.msra.mxu0 0
    %171 = vmatprep.subr.bf16.mxu0 0
    %172 = vmatpush1.bf16.msra.mxu0 0
    %173 = vmatprep.subr.bf16.mxu0 0
    %174 = vmatpush1.bf16.msra.mxu0 0
    %175 = vmatprep.subr.bf16.mxu0 0
    %176 = vmatpush1.bf16.msra.mxu0 0
    %177 = vmatprep.mubr.bf16.mxu0 0
    %178 = vmatmul.mubr.bf16.gmra.mrb[0].mxu0 %v143
    %v179 = vpop.f32.mrb[0].mxu0
    %v180 = vadd.f32 %v120, %v179
    %v181 = vpop.f32.mrb[0].mxu0
    %v182 = vpop.f32.mrb[0].mxu0
    %v183 = vpop.f32.mrb[0].mxu0
    %184 = vdwg.mxu0
    %v185 = vld [vmem:[#allocation2] sm:$0xf]
    %v186 = vld [vmem:[#allocation2 + $0x4] sm:$0xf]
    %v187 = vld [vmem:[#allocation2 + $0x8] sm:$0xf]
    %v188 = vld [vmem:[#allocation2 + $0xc] sm:$0xf]
    %v189 = vld [vmem:[#allocation5] sm:$0x1]
    %v191 = vlaneseq
    %v192 = vshrl.u32 %v191, 7
    %v193 = vsub.s32 0, %v192
    %v194 = vrot.slane %v189, %v193
    %v200 = vunpack.c.l.b16 %v185
    %v201 = vunpack.c.l.b16 %v186
    %v202 = vunpack.c.l.b16 %v187
    %v203 = vunpack.c.l.b16 %v188
    %v204 = vpack.c.b16 %v201, %v200
    %v205 = vpack.c.b16 %v203, %v202
    %v209 = vsel %vm76, %v107, 0
    %v212 = vsel %vm76, %v108, 0
    %214 = vmatprep.subr.bf16.mxu0 0
    %215 = vmatpush1.bf16.msra.mxu0 %v204
    %216 = vmatprep.subr.bf16.mxu0 0
    %217 = vmatpush1.bf16.msra.mxu0 %v205
    %218 = vmatprep.subr.bf16.mxu0 0
    %219 = vmatpush1.bf16.msra.mxu0 0
    %220 = vmatprep.subr.bf16.mxu0 0
    %221 = vmatpush1.bf16.msra.mxu0 0
    %222 = vmatprep.subr.bf16.mxu0 0
    %223 = vmatpush1.bf16.msra.mxu0 0
    %224 = vmatprep.subr.bf16.mxu0 0
    %225 = vmatpush1.bf16.msra.mxu0 0
    %226 = vmatprep.subr.bf16.mxu0 0
    %227 = vmatpush1.bf16.msra.mxu0 0
    %228 = vmatprep.subr.bf16.mxu0 0
    %229 = vmatpush1.bf16.msra.mxu0 0
    %230 = vmatprep.subr.bf16.mxu0 0
    %231 = vmatpush1.bf16.msra.mxu0 0
    %232 = vmatprep.subr.bf16.mxu0 0
    %233 = vmatpush1.bf16.msra.mxu0 0
    %234 = vmatprep.subr.bf16.mxu0 0
    %235 = vmatpush1.bf16.msra.mxu0 0
    %236 = vmatprep.subr.bf16.mxu0 0
    %237 = vmatpush1.bf16.msra.mxu0 0
    %238 = vmatprep.subr.bf16.mxu0 0
    %239 = vmatpush1.bf16.msra.mxu0 0
    %240 = vmatprep.subr.bf16.mxu0 0
    %241 = vmatpush1.bf16.msra.mxu0 0
    %242 = vmatprep.subr.bf16.mxu0 0
    %243 = vmatpush1.bf16.msra.mxu0 0
    %244 = vmatprep.subr.bf16.mxu0 0
    %245 = vmatpush1.bf16.msra.mxu0 0
    %246 = vmatprep.mubr.bf16.mxu0 0
    %247 = vmatmul.mubr.bf16.gmra.mrb[0].mxu0 %v209
    %v248 = vpop.f32.mrb[0].mxu0
    %v249 = vadd.f32 %v194, %v248
    %v250 = vpop.f32.mrb[0].mxu0
    %v251 = vpop.f32.mrb[0].mxu0
    %v252 = vadd.f32 %v194, %v251
    %v253 = vpop.f32.mrb[0].mxu0
    %254 = vmatprep.mubr.bf16.mxu0 0
    %255 = vmatmul.mubr.bf16.gmra.mrb[0].mxu0 %v212
    %v256 = vpop.f32.mrb[0].mxu0
    %v257 = vadd.f32 %v194, %v256
    %v258 = vpop.f32.mrb[0].mxu0
    %v259 = vpop.f32.mrb[0].mxu0
    %v260 = vadd.f32 %v194, %v259
    %v261 = vpop.f32.mrb[0].mxu0
    %262 = vdwg.mxu0
    %263 = vmatprep.subr.bf16.mxu0 0
    %264 = vmatpush1.bf16.msra.mxu0 %v204
    %265 = vmatprep.subr.bf16.mxu0 0
    %266 = vmatpush1.bf16.msra.mxu0 %v205
    %267 = vmatprep.subr.bf16.mxu0 0
    %268 = vmatpush1.bf16.msra.mxu0 0
    %269 = vmatprep.subr.bf16.mxu0 0
    %270 = vmatpush1.bf16.msra.mxu0 0
    %271 = vmatprep.subr.bf16.mxu0 0
    %272 = vmatpush1.bf16.msra.mxu0 0
    %273 = vmatprep.subr.bf16.mxu0 0
    %274 = vmatpush1.bf16.msra.mxu0 0
    %275 = vmatprep.subr.bf16.mxu0 0
    %276 = vmatpush1.bf16.msra.mxu0 0
    %277 = vmatprep.subr.bf16.mxu0 0
    %278 = vmatpush1.bf16.msra.mxu0 0
    %279 = vmatprep.subr.bf16.mxu0 0
    %280 = vmatpush1.bf16.msra.mxu0 0
    %281 = vmatprep.subr.bf16.mxu0 0
    %282 = vmatpush1.bf16.msra.mxu0 0
    %283 = vmatprep.subr.bf16.mxu0 0
    %284 = vmatpush1.bf16.msra.mxu0 0
    %285 = vmatprep.subr.bf16.mxu0 0
    %286 = vmatpush1.bf16.msra.mxu0 0
    %287 = vmatprep.subr.bf16.mxu0 0
    %288 = vmatpush1.bf16.msra.mxu0 0
    %289 = vmatprep.subr.bf16.mxu0 0
    %290 = vmatpush1.bf16.msra.mxu0 0
    %291 = vmatprep.subr.bf16.mxu0 0
    %292 = vmatpush1.bf16.msra.mxu0 0
    %293 = vmatprep.subr.bf16.mxu0 0
    %294 = vmatpush1.bf16.msra.mxu0 0
    %295 = vmatprep.mubr.bf16.mxu0 0
    %296 = vmatmul.mubr.bf16.gmra.mrb[0].mxu0 %v143
    %v297 = vpop.f32.mrb[0].mxu0
    %v298 = vadd.f32 %v194, %v297
    %v299 = vpop.f32.mrb[0].mxu0
    %v300 = vpop.f32.mrb[0].mxu0
    %v301 = vpop.f32.mrb[0].mxu0
    %302 = vdwg.mxu0
    %v303 = vld [vmem:[%s9] sm:$0xff]
    %v304 = vld [vmem:[%s9 + $0x8] sm:$0xff]
    %v305 = vld [vmem:[%s9 + $0x10] sm:$0xff]
    %v306 = vld [vmem:[%s9 + $0x18] sm:$0xff]
    %v309 = vunpack.c.l.s4 1966171168
    %v310 = vunpack.c.0.s8 %v309
    %v311 = vlaneseq
    %v312 = vshrl.u32 %v311, 7
    %v313 = vsub.s32 %v310, %v312
    %v314 = vrot.slane %v180, %v313
    %v315 = vcombine.high %v314, %v314
    %v317 = vunpack.c.l.s4 1966171168
    %v318 = vunpack.c.0.s8 %v317
    %v319 = vlaneseq
    %v320 = vshrl.u32 %v319, 7
    %v321 = vsub.s32 %v318, %v320
    %v322 = vrot.slane %v314, %v321
    %v324 = vunpack.c.l.s4 1966171168
    %v325 = vunpack.c.0.s8 %v324
    %v326 = vlaneseq
    %v327 = vshrl.u32 %v326, 7
    %v328 = vsub.s32 %v325, %v327
    %v329 = vrot.slane %v315, %v328
    %v330 = vlaneseq
    %v331 = vshrl.u32 %v330, 7
    %v332 = vsub.s32 0, %v331
    %v333 = vrot.slane %v322, %v332
    %v334 = vlaneseq
    %v335 = vshrl.u32 %v334, 7
    %v336 = vsub.s32 0, %v335
    %v337 = vrot.slane %v329, %v336
    %v340 = vmul.f32 %v333, %v249
    %v341 = vmul.f32 %v333, %v252
    %v342 = vmul.f32 %v337, %v257
    %v343 = vmul.f32 %v337, %v260
    %v345 = vsel %vm76, %v340, 0
    %v348 = vsel %vm76, %v341, 0
    %v351 = vsel %vm76, %v342, 0
    %v354 = vsel %vm76, %v343, 0
    %356 = vmatprep.subr.mxu0 0.0
    %357 = vmatpush1.msra.mxu0 %v303
    %358 = vmatprep.subr.mxu0 0.0
    %359 = vmatpush1.msra.mxu0 %v304
    %360 = vmatprep.subr.mxu0 0.0
    %361 = vmatpush1.msra.mxu0 %v305
    %362 = vmatprep.subr.mxu0 0.0
    %363 = vmatpush1.msra.mxu0 %v306
    %364 = vmatprep.subr.mxu0 0.0
    %365 = vmatpush1.msra.mxu0 0.0
    %366 = vmatprep.subr.mxu0 0.0
    %367 = vmatpush1.msra.mxu0 0.0
    %368 = vmatprep.subr.mxu0 0.0
    %369 = vmatpush1.msra.mxu0 0.0
    %370 = vmatprep.subr.mxu0 0.0
    %371 = vmatpush1.msra.mxu0 0.0
    %372 = vmatprep.subr.mxu0 0.0
    %373 = vmatpush1.msra.mxu0 0.0
    %374 = vmatprep.subr.mxu0 0.0
    %375 = vmatpush1.msra.mxu0 0.0
    %376 = vmatprep.subr.mxu0 0.0
    %377 = vmatpush1.msra.mxu0 0.0
    %378 = vmatprep.subr.mxu0 0.0
    %379 = vmatpush1.msra.mxu0 0.0
    %380 = vmatprep.subr.mxu0 0.0
    %381 = vmatpush1.msra.mxu0 0.0
    %382 = vmatprep.subr.mxu0 0.0
    %383 = vmatpush1.msra.mxu0 0.0
    %384 = vmatprep.subr.mxu0 0.0
    %385 = vmatpush1.msra.mxu0 0.0
    %386 = vmatprep.subr.mxu0 0.0
    %387 = vmatpush1.msra.mxu0 0.0
    %388 = vmatprep.subr.mxu0 0.0
    %389 = vmatpush1.msra.mxu0 0.0
    %390 = vmatprep.subr.mxu0 0.0
    %391 = vmatpush1.msra.mxu0 0.0
    %392 = vmatprep.subr.mxu0 0.0
    %393 = vmatpush1.msra.mxu0 0.0
    %394 = vmatprep.subr.mxu0 0.0
    %395 = vmatpush1.msra.mxu0 0.0
    %396 = vmatprep.subr.mxu0 0.0
    %397 = vmatpush1.msra.mxu0 0.0
    %398 = vmatprep.subr.mxu0 0.0
    %399 = vmatpush1.msra.mxu0 0.0
    %400 = vmatprep.subr.mxu0 0.0
    %401 = vmatpush1.msra.mxu0 0.0
    %402 = vmatprep.subr.mxu0 0.0
    %403 = vmatpush1.msra.mxu0 0.0
    %404 = vmatprep.subr.mxu0 0.0
    %405 = vmatpush1.msra.mxu0 0.0
    %406 = vmatprep.subr.mxu0 0.0
    %407 = vmatpush1.msra.mxu0 0.0
    %408 = vmatprep.subr.mxu0 0.0
    %409 = vmatpush1.msra.mxu0 0.0
    %410 = vmatprep.subr.mxu0 0.0
    %411 = vmatpush1.msra.mxu0 0.0
    %412 = vmatprep.subr.mxu0 0.0
    %413 = vmatpush1.msra.mxu0 0.0
    %414 = vmatprep.subr.mxu0 0.0
    %415 = vmatpush1.msra.mxu0 0.0
    %416 = vmatprep.subr.mxu0 0.0
    %417 = vmatpush1.msra.mxu0 0.0
    %418 = vmatprep.subr.mxu0 0.0
    %419 = vmatpush1.msra.mxu0 0.0
    %420 = vmatprep.mubr.f32.mxu0 0.0
    %421 = vmatmul.mubr.f32.gmra.mrb[0].mxu0 %v345
    %v422 = vpop.f32.mrb[0].mxu0
    %v423 = vadd.f32 0.0, %v422
    %v424 = vpop.f32.mrb[0].mxu0
    %425 = vmatprep.mubr.f32.mxu0 0.0
    %426 = vmatmul.mubr.f32.gmra.mrb[0].mxu0 %v348
    %v427 = vpop.f32.mrb[0].mxu0
    %v428 = vadd.f32 0.0, %v427
    %v429 = vpop.f32.mrb[0].mxu0
    %430 = vmatprep.mubr.f32.mxu0 0.0
    %431 = vmatmul.mubr.f32.gmra.mrb[0].mxu0 %v351
    %v432 = vpop.f32.mrb[0].mxu0
    %v433 = vadd.f32 0.0, %v432
    %v434 = vpop.f32.mrb[0].mxu0
    %435 = vmatprep.mubr.f32.mxu0 0.0
    %436 = vmatmul.mubr.f32.gmra.mrb[0].mxu0 %v354
    %v437 = vpop.f32.mrb[0].mxu0
    %v438 = vadd.f32 0.0, %v437
    %v439 = vpop.f32.mrb[0].mxu0
    %440 = vdwg.mxu0
    %v441 = vmul.f32 %v180, %v298
    %v443 = vsel %vm76, %v441, 0
    %445 = vmatprep.subr.mxu0 0.0
    %446 = vmatpush1.msra.mxu0 %v303
    %447 = vmatprep.subr.mxu0 0.0
    %448 = vmatpush1.msra.mxu0 %v304
    %449 = vmatprep.subr.mxu0 0.0
    %450 = vmatpush1.msra.mxu0 %v305
    %451 = vmatprep.subr.mxu0 0.0
    %452 = vmatpush1.msra.mxu0 %v306
    %453 = vmatprep.subr.mxu0 0.0
    %454 = vmatpush1.msra.mxu0 0.0
    %455 = vmatprep.subr.mxu0 0.0
    %456 = vmatpush1.msra.mxu0 0.0
    %457 = vmatprep.subr.mxu0 0.0
    %458 = vmatpush1.msra.mxu0 0.0
    %459 = vmatprep.subr.mxu0 0.0
    %460 = vmatpush1.msra.mxu0 0.0
    %461 = vmatprep.subr.mxu0 0.0
    %462 = vmatpush1.msra.mxu0 0.0
    %463 = vmatprep.subr.mxu0 0.0
    %464 = vmatpush1.msra.mxu0 0.0
    %465 = vmatprep.subr.mxu0 0.0
    %466 = vmatpush1.msra.mxu0 0.0
    %467 = vmatprep.subr.mxu0 0.0
    %468 = vmatpush1.msra.mxu0 0.0
    %469 = vmatprep.subr.mxu0 0.0
    %470 = vmatpush1.msra.mxu0 0.0
    %471 = vmatprep.subr.mxu0 0.0
    %472 = vmatpush1.msra.mxu0 0.0
    %473 = vmatprep.subr.mxu0 0.0
    %474 = vmatpush1.msra.mxu0 0.0
    %475 = vmatprep.subr.mxu0 0.0
    %476 = vmatpush1.msra.mxu0 0.0
    %477 = vmatprep.subr.mxu0 0.0
    %478 = vmatpush1.msra.mxu0 0.0
    %479 = vmatprep.subr.mxu0 0.0
    %480 = vmatpush1.msra.mxu0 0.0
    %481 = vmatprep.subr.mxu0 0.0
    %482 = vmatpush1.msra.mxu0 0.0
    %483 = vmatprep.subr.mxu0 0.0
    %484 = vmatpush1.msra.mxu0 0.0
    %485 = vmatprep.subr.mxu0 0.0
    %486 = vmatpush1.msra.mxu0 0.0
    %487 = vmatprep.subr.mxu0 0.0
    %488 = vmatpush1.msra.mxu0 0.0
    %489 = vmatprep.subr.mxu0 0.0
    %490 = vmatpush1.msra.mxu0 0.0
    %491 = vmatprep.subr.mxu0 0.0
    %492 = vmatpush1.msra.mxu0 0.0
    %493 = vmatprep.subr.mxu0 0.0
    %494 = vmatpush1.msra.mxu0 0.0
    %495 = vmatprep.subr.mxu0 0.0
    %496 = vmatpush1.msra.mxu0 0.0
    %497 = vmatprep.subr.mxu0 0.0
    %498 = vmatpush1.msra.mxu0 0.0
    %499 = vmatprep.subr.mxu0 0.0
    %500 = vmatpush1.msra.mxu0 0.0
    %501 = vmatprep.subr.mxu0 0.0
    %502 = vmatpush1.msra.mxu0 0.0
    %503 = vmatprep.subr.mxu0 0.0
    %504 = vmatpush1.msra.mxu0 0.0
    %505 = vmatprep.subr.mxu0 0.0
    %506 = vmatpush1.msra.mxu0 0.0
    %507 = vmatprep.subr.mxu0 0.0
    %508 = vmatpush1.msra.mxu0 0.0
    %509 = vmatprep.mubr.f32.mxu0 0.0
    %510 = vmatmul.mubr.f32.gmra.mrb[0].mxu0 %v443
    %v511 = vpop.f32.mrb[0].mxu0
    %v512 = vadd.f32 0.0, %v511
    %v513 = vpop.f32.mrb[0].mxu0
    %514 = vdwg.mxu0
    %vm515 = vcmask 31744
    %v516 = vsel %vm515, %v423, -inf
    %v517 = vsel %vm515, %v428, -inf
    %v518 = vmax.f32 %v516, %v517
    %v519 = vrot.slane %v518, 4
    %v520 = vmax.f32 %v518, %v519
    %v521 = vrot.slane %v520, 2
    %v522 = vmax.f32 %v520, %v521
    %v523 = vrot.slane %v522, 1
    %v524 = vmax.f32 %v522, %v523
    %v525 = vsel %vm515, %v433, -inf
    %v526 = vsel %vm515, %v438, -inf
    %v527 = vmax.f32 %v525, %v526
    %v528 = vrot.slane %v527, 4
    %v529 = vmax.f32 %v527, %v528
    %v530 = vrot.slane %v529, 2
    %v531 = vmax.f32 %v529, %v530
    %v532 = vrot.slane %v531, 1
    %v533 = vmax.f32 %v531, %v532
    %v535 = vrot.slane %v512, 1
    %v538 = vmax.f32 %v524, %v512
    %v539 = vmax.f32 %v533, %v535
    %v540 = vlaneseq
    %v541 = vshrl.u32 %v540, 7
    %v542 = vsub.s32 0, %v541
    %v543 = vrot.slane %v538, %v542
    %v544 = vlaneseq
    %v545 = vshrl.u32 %v544, 7
    %v546 = vsub.s32 0, %v545
    %v547 = vrot.slane %v539, %v546
    %v548 = vsub.f32 %v423, %v543
    %v549 = vsub.f32 %v428, %v543
    %v550 = vsub.f32 %v433, %v547
    %v551 = vsub.f32 %v438, %v547
    %v552 = vmul.f32 %v548, 1.442695
    %v553 = vpow.pop %v552
    %v554 = vmul.f32 %v549, 1.442695
    %v555 = vpow.pop %v554
    %v556 = vmul.f32 %v550, 1.442695
    %v557 = vpow.pop %v556
    %v558 = vmul.f32 %v551, 1.442695
    %v559 = vpow.pop %v558
    %v562 = vrot.slane %v539, 7
    %v563 = vsel %vm127, %v562, %v538
    %v565 = vsub.f32 %v512, %v563
    %v566 = vmul.f32 %v565, 1.442695
    %v567 = vpow.pop %v566
    %v568 = vsel %vm515, %v553, 0.0
    %v569 = vsel %vm515, %v555, 0.0
    %v570 = vadd.f32 %v568, %v569
    %v571 = vrot.slane %v570, 4
    %v572 = vadd.f32 %v570, %v571
    %v573 = vrot.slane %v572, 2
    %v574 = vadd.f32 %v572, %v573
    %v575 = vrot.slane %v574, 1
    %v576 = vadd.f32 %v574, %v575
    %v577 = vsel %vm515, %v557, 0.0
    %v578 = vsel %vm515, %v559, 0.0
    %v579 = vadd.f32 %v577, %v578
    %v580 = vrot.slane %v579, 4
    %v581 = vadd.f32 %v579, %v580
    %v582 = vrot.slane %v581, 2
    %v583 = vadd.f32 %v581, %v582
    %v584 = vrot.slane %v583, 1
    %v585 = vadd.f32 %v583, %v584
    %v587 = vrot.slane %v567, 1
    %v590 = vadd.f32 %v576, %v567
    %v591 = vadd.f32 %v585, %v587
    %v592 = vrcp.pop %v590
    %v593 = vrcp.pop %v591
    %v594 = vlaneseq
    %v595 = vshrl.u32 %v594, 7
    %v596 = vsub.s32 0, %v595
    %v597 = vrot.slane %v592, %v596
    %v598 = vlaneseq
    %v599 = vshrl.u32 %v598, 7
    %v600 = vsub.s32 0, %v599
    %v601 = vrot.slane %v593, %v600
    %v602 = vmul.f32 %v553, %v597
    %v603 = vmul.f32 %v555, %v597
    %v604 = vmul.f32 %v557, %v601
    %v605 = vmul.f32 %v559, %v601
    %v608 = vrot.slane %v593, 7
    %v609 = vsel %vm127, %v608, %v592
    %v611 = vmul.f32 %v567, %v609
    %v612 = vld [vmem:[%s10] sm:$0xf]
    %v614 = vsel %vm515, %v602, 0
    %v617 = vsel %vm515, %v603, 0
    %v620 = vsel %vm515, %v604, 0
    %v623 = vsel %vm515, %v605, 0
    %vm625 = vcmask 1043456
    %v627 = vsel %vm625, %v612, 0
    %629 = vmatprep.subr.mxu0 0.0
    %630 = vmatpush1.msra.mxu0 %v627
    %631 = vmatprep.subr.mxu0 0.0
    %632 = vmatpush1.msra.mxu0 0.0
    %633 = vmatprep.subr.mxu0 0.0
    %634 = vmatpush1.msra.mxu0 0.0
    %635 = vmatprep.subr.mxu0 0.0
    %636 = vmatpush1.msra.mxu0 0.0
    %637 = vmatprep.subr.mxu0 0.0
    %638 = vmatpush1.msra.mxu0 0.0
    %639 = vmatprep.subr.mxu0 0.0
    %640 = vmatpush1.msra.mxu0 0.0
    %641 = vmatprep.subr.mxu0 0.0
    %642 = vmatpush1.msra.mxu0 0.0
    %643 = vmatprep.subr.mxu0 0.0
    %644 = vmatpush1.msra.mxu0 0.0
    %645 = vmatprep.subr.mxu0 0.0
    %646 = vmatpush1.msra.mxu0 0.0
    %647 = vmatprep.subr.mxu0 0.0
    %648 = vmatpush1.msra.mxu0 0.0
    %649 = vmatprep.subr.mxu0 0.0
    %650 = vmatpush1.msra.mxu0 0.0
    %651 = vmatprep.subr.mxu0 0.0
    %652 = vmatpush1.msra.mxu0 0.0
    %653 = vmatprep.subr.mxu0 0.0
    %654 = vmatpush1.msra.mxu0 0.0
    %655 = vmatprep.subr.mxu0 0.0
    %656 = vmatpush1.msra.mxu0 0.0
    %657 = vmatprep.subr.mxu0 0.0
    %658 = vmatpush1.msra.mxu0 0.0
    %659 = vmatprep.subr.mxu0 0.0
    %660 = vmatpush1.msra.mxu0 0.0
    %661 = vmatprep.subr.mxu0 0.0
    %662 = vmatpush1.msra.mxu0 0.0
    %663 = vmatprep.subr.mxu0 0.0
    %664 = vmatpush1.msra.mxu0 0.0
    %665 = vmatprep.subr.mxu0 0.0
    %666 = vmatpush1.msra.mxu0 0.0
    %667 = vmatprep.subr.mxu0 0.0
    %668 = vmatpush1.msra.mxu0 0.0
    %669 = vmatprep.subr.mxu0 0.0
    %670 = vmatpush1.msra.mxu0 0.0
    %671 = vmatprep.subr.mxu0 0.0
    %672 = vmatpush1.msra.mxu0 0.0
    %673 = vmatprep.subr.mxu0 0.0
    %674 = vmatpush1.msra.mxu0 0.0
    %675 = vmatprep.subr.mxu0 0.0
    %676 = vmatpush1.msra.mxu0 0.0
    %677 = vmatprep.subr.mxu0 0.0
    %678 = vmatpush1.msra.mxu0 0.0
    %679 = vmatprep.subr.mxu0 0.0
    %680 = vmatpush1.msra.mxu0 0.0
    %681 = vmatprep.subr.mxu0 0.0
    %682 = vmatpush1.msra.mxu0 0.0
    %683 = vmatprep.subr.mxu0 0.0
    %684 = vmatpush1.msra.mxu0 0.0
    %685 = vmatprep.subr.mxu0 0.0
    %686 = vmatpush1.msra.mxu0 0.0
    %687 = vmatprep.subr.mxu0 0.0
    %688 = vmatpush1.msra.mxu0 0.0
    %689 = vmatprep.subr.mxu0 0.0
    %690 = vmatpush1.msra.mxu0 0.0
    %691 = vmatprep.subr.mxu0 0.0
    %692 = vmatpush1.msra.mxu0 0.0
    %693 = vmatprep.mubr.f32.mxu0 0.0
    %694 = vmatmul.mubr.f32.gmra.mrb[0].mxu0 %v614
    %v695 = vpop.f32.mrb[0].mxu0
    %v696 = vadd.f32 0.0, %v695
    %v697 = vpop.f32.mrb[0].mxu0
    %698 = vmatprep.mubr.f32.mxu0 0.0
    %699 = vmatmul.mubr.f32.gmra.mrb[0].mxu0 %v617
    %v700 = vpop.f32.mrb[0].mxu0
    %v701 = vadd.f32 0.0, %v700
    %v702 = vpop.f32.mrb[0].mxu0
    %703 = vmatprep.mubr.f32.mxu0 0.0
    %704 = vmatmul.mubr.f32.gmra.mrb[0].mxu0 %v620
    %v705 = vpop.f32.mrb[0].mxu0
    %v706 = vadd.f32 0.0, %v705
    %v707 = vpop.f32.mrb[0].mxu0
    %708 = vmatprep.mubr.f32.mxu0 0.0
    %709 = vmatmul.mubr.f32.gmra.mrb[0].mxu0 %v623
    %v710 = vpop.f32.mrb[0].mxu0
    %v711 = vadd.f32 0.0, %v710
    %v712 = vpop.f32.mrb[0].mxu0
    %713 = vdwg.mxu0
    %v715 = vsel %vm515, %v611, 0
    %717 = vmatprep.subr.mxu0 0.0
    %718 = vmatpush1.msra.mxu0 %v627
    %719 = vmatprep.subr.mxu0 0.0
    %720 = vmatpush1.msra.mxu0 0.0
    %721 = vmatprep.subr.mxu0 0.0
    %722 = vmatpush1.msra.mxu0 0.0
    %723 = vmatprep.subr.mxu0 0.0
    %724 = vmatpush1.msra.mxu0 0.0
    %725 = vmatprep.subr.mxu0 0.0
    %726 = vmatpush1.msra.mxu0 0.0
    %727 = vmatprep.subr.mxu0 0.0
    %728 = vmatpush1.msra.mxu0 0.0
    %729 = vmatprep.subr.mxu0 0.0
    %730 = vmatpush1.msra.mxu0 0.0
    %731 = vmatprep.subr.mxu0 0.0
    %732 = vmatpush1.msra.mxu0 0.0
    %733 = vmatprep.subr.mxu0 0.0
    %734 = vmatpush1.msra.mxu0 0.0
    %735 = vmatprep.subr.mxu0 0.0
    %736 = vmatpush1.msra.mxu0 0.0
    %737 = vmatprep.subr.mxu0 0.0
    %738 = vmatpush1.msra.mxu0 0.0
    %739 = vmatprep.subr.mxu0 0.0
    %740 = vmatpush1.msra.mxu0 0.0
    %741 = vmatprep.subr.mxu0 0.0
    %742 = vmatpush1.msra.mxu0 0.0
    %743 = vmatprep.subr.mxu0 0.0
    %744 = vmatpush1.msra.mxu0 0.0
    %745 = vmatprep.subr.mxu0 0.0
    %746 = vmatpush1.msra.mxu0 0.0
    %747 = vmatprep.subr.mxu0 0.0
    %748 = vmatpush1.msra.mxu0 0.0
    %749 = vmatprep.subr.mxu0 0.0
    %750 = vmatpush1.msra.mxu0 0.0
    %751 = vmatprep.subr.mxu0 0.0
    %752 = vmatpush1.msra.mxu0 0.0
    %753 = vmatprep.subr.mxu0 0.0
    %754 = vmatpush1.msra.mxu0 0.0
    %755 = vmatprep.subr.mxu0 0.0
    %756 = vmatpush1.msra.mxu0 0.0
    %757 = vmatprep.subr.mxu0 0.0
    %758 = vmatpush1.msra.mxu0 0.0
    %759 = vmatprep.subr.mxu0 0.0
    %760 = vmatpush1.msra.mxu0 0.0
    %761 = vmatprep.subr.mxu0 0.0
    %762 = vmatpush1.msra.mxu0 0.0
    %763 = vmatprep.subr.mxu0 0.0
    %764 = vmatpush1.msra.mxu0 0.0
    %765 = vmatprep.subr.mxu0 0.0
    %766 = vmatpush1.msra.mxu0 0.0
    %767 = vmatprep.subr.mxu0 0.0
    %768 = vmatpush1.msra.mxu0 0.0
    %769 = vmatprep.subr.mxu0 0.0
    %770 = vmatpush1.msra.mxu0 0.0
    %771 = vmatprep.subr.mxu0 0.0
    %772 = vmatpush1.msra.mxu0 0.0
    %773 = vmatprep.subr.mxu0 0.0
    %774 = vmatpush1.msra.mxu0 0.0
    %775 = vmatprep.subr.mxu0 0.0
    %776 = vmatpush1.msra.mxu0 0.0
    %777 = vmatprep.subr.mxu0 0.0
    %778 = vmatpush1.msra.mxu0 0.0
    %779 = vmatprep.subr.mxu0 0.0
    %780 = vmatpush1.msra.mxu0 0.0
    %781 = vmatprep.mubr.f32.mxu0 0.0
    %782 = vmatmul.mubr.f32.gmra.mrb[0].mxu0 %v715
    %v783 = vpop.f32.mrb[0].mxu0
    %v784 = vadd.f32 0.0, %v783
    %v785 = vpop.f32.mrb[0].mxu0
    %786 = vdwg.mxu0
    %791 = vrot.lane.b32.xlu0 %v249, 96
    %v792 = vpop.permute.xlu0 %791
    %793 = vrot.lane.b32.xlu0 %v252, 96
    %v794 = vpop.permute.xlu0 %793
    %795 = vrot.lane.b32.xlu0 %v257, 96
    %v796 = vpop.permute.xlu0 %795
    %797 = vrot.lane.b32.xlu0 %v260, 96
    %v798 = vpop.permute.xlu0 %797
    %v803 = vmul.f32 %v696, %v792
    %v804 = vmul.f32 %v701, %v794
    %v805 = vmul.f32 %v706, %v796
    %v806 = vmul.f32 %v711, %v798
    %v807 = vsel %vm76, %v803, 0.0
    %v808 = vsel %vm76, %v804, 0.0
    %v809 = vadd.f32 %v807, %v808
    %v810 = vrot.slane %v809, 4
    %v811 = vadd.f32 %v809, %v810
    %v812 = vrot.slane %v811, 2
    %v813 = vadd.f32 %v811, %v812
    %v814 = vrot.slane %v813, 1
    %v815 = vadd.f32 %v813, %v814
    %v816 = vsel %vm76, %v805, 0.0
    %v817 = vsel %vm76, %v806, 0.0
    %v818 = vadd.f32 %v816, %v817
    %v819 = vrot.slane %v818, 4
    %v820 = vadd.f32 %v818, %v819
    %v821 = vrot.slane %v820, 2
    %v822 = vadd.f32 %v820, %v821
    %v823 = vrot.slane %v822, 1
    %v824 = vadd.f32 %v822, %v823
    %826 = vrot.lane.b32.xlu0 %v298, 96
    %v827 = vpop.permute.xlu0 %826
    %v829 = vmul.f32 %v784, %v827
    %v831 = vrot.slane %v829, 1
    %v834 = vadd.f32 %v815, %v829
    %v835 = vadd.f32 %v824, %v831
    %v836 = vpack.c.bf16 %v834, %v834
    %v837 = vpack.c.bf16 %v835, %v835
    %v838 = vld [vmem:[%s7] sm:$0xf]
    %v839 = vld [vmem:[%s7 + $0x4] sm:$0xf]
    %v840 = vld [vmem:[%s7 + $0x8] sm:$0xf]
    %v841 = vld [vmem:[%s7 + $0xc] sm:$0xf]
    %v842 = vld [vmem:[%s8] sm:$0x1]
    %v844 = vlaneseq
    %v845 = vshrl.u32 %v844, 7
    %v846 = vsub.s32 0, %v845
    %v847 = vrot.slane %v842, %v846
    %v851 = vunpack.c.l.b16 %v836
    %v852 = vunpack.c.l.b16 %v837
    %v853 = vrot.slane %v852, 7
    %v854 = vsel %vm127, %v853, %v851
    %v855 = vpack.c.b16 %v854, %v854
    %v860 = vunpack.c.l.b16 %v838
    %v861 = vunpack.c.l.b16 %v839
    %v862 = vunpack.c.l.b16 %v840
    %v863 = vunpack.c.l.b16 %v841
    %v864 = vpack.c.b16 %v861, %v860
    %v865 = vpack.c.b16 %v863, %v862
    %v869 = vsel %vm76, %v855, 0
    %871 = vmatprep.subr.bf16.mxu0 0
    %872 = vmatpush1.bf16.msra.mxu0 %v864
    %873 = vmatprep.subr.bf16.mxu0 0
    %874 = vmatpush1.bf16.msra.mxu0 %v865
    %875 = vmatprep.subr.bf16.mxu0 0
    %876 = vmatpush1.bf16.msra.mxu0 0
    %877 = vmatprep.subr.bf16.mxu0 0
    %878 = vmatpush1.bf16.msra.mxu0 0
    %879 = vmatprep.subr.bf16.mxu0 0
    %880 = vmatpush1.bf16.msra.mxu0 0
    %881 = vmatprep.subr.bf16.mxu0 0
    %882 = vmatpush1.bf16.msra.mxu0 0
    %883 = vmatprep.subr.bf16.mxu0 0
    %884 = vmatpush1.bf16.msra.mxu0 0
    %885 = vmatprep.subr.bf16.mxu0 0
    %886 = vmatpush1.bf16.msra.mxu0 0
    %887 = vmatprep.subr.bf16.mxu0 0
    %888 = vmatpush1.bf16.msra.mxu0 0
    %889 = vmatprep.subr.bf16.mxu0 0
    %890 = vmatpush1.bf16.msra.mxu0 0
    %891 = vmatprep.subr.bf16.mxu0 0
    %892 = vmatpush1.bf16.msra.mxu0 0
    %893 = vmatprep.subr.bf16.mxu0 0
    %894 = vmatpush1.bf16.msra.mxu0 0
    %895 = vmatprep.subr.bf16.mxu0 0
    %896 = vmatpush1.bf16.msra.mxu0 0
    %897 = vmatprep.subr.bf16.mxu0 0
    %898 = vmatpush1.bf16.msra.mxu0 0
    %899 = vmatprep.subr.bf16.mxu0 0
    %900 = vmatpush1.bf16.msra.mxu0 0
    %901 = vmatprep.subr.bf16.mxu0 0
    %902 = vmatpush1.bf16.msra.mxu0 0
    %903 = vmatprep.mubr.bf16.mxu0 0
    %904 = vmatmul.mubr.bf16.gmra.mrb[0].mxu0 %v869
    %v905 = vpop.f32.mrb[0].mxu0
    %v906 = vadd.f32 %v847, %v905
    %v907 = vpop.f32.mrb[0].mxu0
    %v908 = vpop.f32.mrb[0].mxu0
    %v909 = vpop.f32.mrb[0].mxu0
    %910 = vdwg.mxu0
    %vm911 = vcmask 123904
    %912 = vst.msk [vmem:[#allocation7] sm:$0x3] %vm911, %v906
    // Predicated region
    $region54: #{tpu_custom_call.1} parent=1 // pred_check
      _
    $region55: #{tpu_custom_call.1} parent=1 // pred_check_branch
      %914 = sbr.rel (0) target = $region57
    $region56: #{tpu_custom_call.1} parent=1 // pred_region
      %s916 = ssub.s32 32, 32
      %917 = vsyncadd [#allocation4], %s916
      %s919 = sshll.u32 [#allocation7], 4
      %s920 = int_to_ptr.vmem [resolvable:$true] %s919
      %922 = dma.vmem_to_hbm [thread:$0]  %s920, 32, %s11, [#allocation4]
    $region57: #{tpu_custom_call.1} parent=1 // pred_fallthru
      _
    // Predicated region
    $region58: #{tpu_custom_call.1} parent=1 // pred_check
      _
    $region59: #{tpu_custom_call.1} parent=1 // pred_check_branch
      %924 = sbr.rel (0) target = $region61
    $region60: #{tpu_custom_call.1} parent=1 // pred_region
      %925 = dma.done [#allocation4], 32
    $region61: #{tpu_custom_call.1} parent=1 // pred_fallthru
      _
    %926 = vsyncpa [#allocation3], 1
    %927 = vsyncpa [#allocation6], 1
    %928 = vsyncpa [#allocation4], 1

</llo_original>
